<compile_context>
chip_gen: v6e
topology: v6e:2x2x1
jax: 0.10.0
libtpu: 0.0.40
codegen_flags: <defaults>
</compile_context>

<pallas_src>
import jax
import jax.numpy as jnp
from jax.experimental import pallas as pl
from jax.experimental.pallas import tpu as pltpu

_MAX_BLOCK_BATCH = 4096   # rows per batch tile (cap)


# --------------------------------------------------------------------------
# Kernel: both Q heads fused, one batch tile per grid step.
# --------------------------------------------------------------------------
def _td3_critic_kernel(sa_ref, w1_ref, b1_ref, w2_ref, b2_ref, w3_ref, b3_ref,
                       q_ref):
    dt = w1_ref.dtype  # compute dtype of the streamed operands (bf16 or f32)

    # Layer 1 (both heads): single matmul on the pre-concatenated (tb, sd+ad).
    h = jnp.dot(sa_ref[...], w1_ref[...],
                preferred_element_type=jnp.float32) + b1_ref[...]
    h = jnp.maximum(h, 0.0)

    # Layer 2: block-diag(W2, W5) keeps the two heads independent.
    h = jnp.dot(h.astype(dt), w2_ref[...],
                preferred_element_type=jnp.float32) + b2_ref[...]
    h = jnp.maximum(h, 0.0)

    # Layer 3: block-diag(W3, W6) -> [q1 | q2] in one (tb, 2*fc3) store.
    q = jnp.dot(h.astype(dt), w3_ref[...],
                preferred_element_type=jnp.float32) + b3_ref[...]
    q_ref[...] = q.astype(q_ref.dtype)


# --------------------------------------------------------------------------
# Parameter fusion (done once, outside the hot path).
# --------------------------------------------------------------------------
def fuse_td3_critic_params(params, dtype=jnp.bfloat16):
    """Fuse the six Linear layers of the two Q heads into three weights.

    Weights are cast to `dtype` (bf16 by default, MXU-native); biases stay f32
    since they are added to the f32 accumulator inside the kernel.
    """
    f32 = jnp.float32
    fc1 = params["w1"].shape[1]
    fc2 = params["w2"].shape[1]
    fc3 = params["w3"].shape[1]

    z12 = jnp.zeros((fc1, fc2), f32)
    z23 = jnp.zeros((fc2, fc3), f32)

    w1 = jnp.concatenate([params["w1"], params["w4"]], axis=1)        # (sd+ad, 2fc1)
    w2 = jnp.concatenate(
        [jnp.concatenate([params["w2"], z12], axis=1),
         jnp.concatenate([z12, params["w5"]], axis=1)], axis=0)       # (2fc1, 2fc2)
    w3 = jnp.concatenate(
        [jnp.concatenate([params["w3"], z23], axis=1),
         jnp.concatenate([z23, params["w6"]], axis=1)], axis=0)       # (2fc2, 2fc3)

    return {
        "w1": w1.astype(dtype),
        "b1": jnp.concatenate([params["b1"], params["b4"]], axis=1).astype(f32),
        "w2": w2.astype(dtype),
        "b2": jnp.concatenate([params["b2"], params["b5"]], axis=1).astype(f32),
        "w3": w3.astype(dtype),
        "b3": jnp.concatenate([params["b3"], params["b6"]], axis=1).astype(f32),
    }


def _round_up(x, m):
    return ((x + m - 1) // m) * m


def _pick_block_batch(B, block_batch):
    """Batch-tile selection (VMEM-aware, megacore-aware, (8,128)-safe)."""
    if block_batch is None:
        if B < 512:
            return B                      # single full-array block, grid=(1,)
        # >= 2 (even) grid steps so both v7x TensorCores get work; cap rows so
        # lane-padded double-buffered tiles stay comfortably under the 32 MiB
        # scoped-VMEM limit we request below.
        n_steps = max(2, 2 * pl.cdiv(B, 2 * _MAX_BLOCK_BATCH))
        return _round_up(pl.cdiv(B, n_steps), 8)
    # Caller-supplied: clamp + round to a multiple of 8 (the (8,128) rule).
    tb = max(int(block_batch), 1)
    if tb >= B:
        return B
    tb = _round_up(tb, 8)
    return B if tb >= B else tb


# --------------------------------------------------------------------------
# Wrapper
# --------------------------------------------------------------------------
def td3_critic_forward(state, action, fused, *, block_batch=None):
    """TD3 critic forward (both Q heads) with a batch-tiled Pallas kernel."""
    B, state_dim = state.shape
    action_dim = action.shape[1]
    sd_ad = state_dim + action_dim
    F1 = fused["w1"].shape[1]   # 2 * fc1
    F2 = fused["w2"].shape[1]   # 2 * fc2
    F3 = fused["w3"].shape[1]   # 2 * fc3
    fc3 = F3 // 2

    compute_dtype = fused["w1"].dtype
    itm = jnp.dtype(compute_dtype).itemsize

    # Wrapper-side concat: one lane-dense (B, sd+ad) stream into the kernel
    # (drops one matmul push per row group + one input operand vs. a split
    # state/action layer 1).
    sa = jnp.concatenate([state, action], axis=1).astype(compute_dtype)

    tb = _pick_block_batch(B, block_batch)
    grid = (pl.cdiv(B, tb),)

    def batch_spec(last):
        return pl.BlockSpec((tb, last), lambda i: (i, 0))

    def full_spec(shape):
        # Weights / biases: same block every grid step -> fetched once.
        return pl.BlockSpec(shape, lambda i: (0, 0))

    flops = 2 * B * (sd_ad * F1 + F1 * F2 + F2 * F3)
    bytes_accessed = (B * sd_ad * itm + B * F3 * 4
                      + (sd_ad * F1 + F1 * F2 + F2 * F3) * itm
                      + (F1 + F2 + F3) * 4)

    q = pl.pallas_call(
        _td3_critic_kernel,
        out_shape=jax.ShapeDtypeStruct((B, F3), jnp.float32),
        grid=grid,
        in_specs=[
            batch_spec(sd_ad),                # sa tile (double-buffered)
            full_spec(fused["w1"].shape),
            full_spec(fused["b1"].shape),
            full_spec(fused["w2"].shape),
            full_spec(fused["b2"].shape),
            full_spec(fused["w3"].shape),
            full_spec(fused["b3"].shape),
        ],
        out_specs=batch_spec(F3),             # single fused [q1 | q2] output
        compiler_params=pltpu.CompilerParams(
            dimension_semantics=("parallel",),
            vmem_limit_bytes=32 * 1024 * 1024),
        cost_estimate=pl.CostEstimate(
            flops=flops, transcendentals=0, bytes_accessed=bytes_accessed),
    )(sa,
      fused["w1"], fused["b1"],
      fused["w2"], fused["b2"],
      fused["w3"], fused["b3"])

    return q[:, :fc3], q[:, fc3:]


# --------------------------------------------------------------------------
# Init + pure-JAX reference (un-fused, matches the PyTorch module exactly)
# --------------------------------------------------------------------------
def init_td3_critic_params(key, state_dim, action_dim, fc1, fc2, fc3):
    """PyTorch-style init: U(-1/sqrt(fan_in), 1/sqrt(fan_in))."""
    dims = [
        (state_dim + action_dim, fc1),  # l1
        (fc1, fc2),                     # l2
        (fc2, fc3),                     # l3
        (state_dim + action_dim, fc1),  # l4
        (fc1, fc2),                     # l5
        (fc2, fc3),                     # l6
    ]
    params = {}
    keys = jax.random.split(key, 2 * len(dims))
    for idx, (fan_in, fan_out) in enumerate(dims):
        bound = 1.0 / jnp.sqrt(jnp.float32(fan_in))
        wk, bk = keys[2 * idx], keys[2 * idx + 1]
        params[f"w{idx + 1}"] = jax.random.uniform(
            wk, (fan_in, fan_out), jnp.float32, -bound, bound)
        params[f"b{idx + 1}"] = jax.random.uniform(
            bk, (1, fan_out), jnp.float32, -bound, bound)
    return params


def _reference_forward(state, action, params):
    sa = jnp.concatenate([state, action], axis=1)
    h = jnp.maximum(sa @ params["w1"] + params["b1"], 0.0)
    h = jnp.maximum(h @ params["w2"] + params["b2"], 0.0)
    q1 = h @ params["w3"] + params["b3"]
    g = jnp.maximum(sa @ params["w4"] + params["b4"], 0.0)
    g = jnp.maximum(g @ params["w5"] + params["b5"], 0.0)
    q2 = g @ params["w6"] + params["b6"]
    return q1, q2


# --------------------------------------------------------------------------
# Demo / self-check
# --------------------------------------------------------------------------
if __name__ == "__main__":
    batch = 2
    state_dim = 12
    action_dim = 4
    fc1, fc2, fc3 = 32, 32, 1   # model.fc1, model.fc2, model.fc3

    key = jax.random.PRNGKey(0)
    k_params, k_state, k_action, k_state2, k_action2 = jax.random.split(key, 5)

    params = init_td3_critic_params(k_params, state_dim, action_dim, fc1, fc2, fc3)
    fused_f32 = fuse_td3_critic_params(params, dtype=jnp.float32)
    fused_bf16 = fuse_td3_critic_params(params, dtype=jnp.bfloat16)

    state = jax.random.normal(k_state, (batch, state_dim), jnp.float32)
    action = jax.random.normal(k_action, (batch, action_dim), jnp.float32)
    q1_ref, q2_ref = _reference_forward(state, action, params)

    # 1) Exact f32 path, single-block grid.
    q1, q2 = td3_critic_forward(state, action, fused_f32)
    q1 = jax.block_until_ready(q1)
    q2 = jax.block_until_ready(q2)
    assert q1.shape == (batch, fc3) and q2.shape == (batch, fc3)
    assert jnp.allclose(q1, q1_ref, atol=1e-5, rtol=1e-5)
    assert jnp.allclose(q2, q2_ref, atol=1e-5, rtol=1e-5)

    # 2) bf16 streaming path (f32 accumulation), single-block grid.
    q1b, q2b = td3_critic_forward(state, action, fused_bf16)
    q1b = jax.block_until_ready(q1b)
    q2b = jax.block_until_ready(q2b)
    assert jnp.allclose(q1b, q1_ref, atol=3e-2, rtol=3e-2)
    assert jnp.allclose(q2b, q2_ref, atol=3e-2, rtol=3e-2)

    # 3) Multi-block batch grid + block_batch rounding (10 -> 16, grid = 4).
    batch2 = 64
    state2 = jax.random.normal(k_state2, (batch2, state_dim), jnp.float32)
    action2 = jax.random.normal(k_action2, (batch2, action_dim), jnp.float32)
    q1c, q2c = td3_critic_forward(state2, action2, fused_bf16, block_batch=10)
    q1c = jax.block_until_ready(q1c)
    q2c = jax.block_until_ready(q2c)
    q1c_ref, q2c_ref = _reference_forward(state2, action2, params)
    assert jnp.allclose(q1c, q1c_ref, atol=3e-2, rtol=3e-2)
    assert jnp.allclose(q2c, q2c_ref, atol=3e-2, rtol=3e-2)

    print("KERNEL_OK")
</pallas_src>

<mosaic_0001>
module attributes {stable_mosaic.version = 11 : i64} {
  func.func @_td3_critic_kernel(%arg0: i32, %arg1: memref<2x16xf32, #tpu.memory_space<vmem>>, %arg2: memref<16x64xf32, #tpu.memory_space<vmem>>, %arg3: memref<1x64xf32, #tpu.memory_space<vmem>>, %arg4: memref<64x64xf32, #tpu.memory_space<vmem>>, %arg5: memref<1x64xf32, #tpu.memory_space<vmem>>, %arg6: memref<64x2xf32, #tpu.memory_space<vmem>>, %arg7: memref<1x2xf32, #tpu.memory_space<vmem>>, %arg8: memref<2x2xf32, #tpu.memory_space<vmem>>) attributes {dimension_semantics = [#tpu.dimension_semantics<parallel>], iteration_bounds = array<i64: 1>, scalar_prefetch = 0 : i64, scratch_operands = 0 : i64, tpu.core_type = #tpu.core_type<tc>, window_params = [{transform_indices = @transform_0, window_bounds = array<i64: 2, 16>}, {pipeline_mode = #tpu.pipeline_mode<synchronous>, transform_indices = @transform_1, window_bounds = array<i64: 16, 64>}, {pipeline_mode = #tpu.pipeline_mode<synchronous>, transform_indices = @transform_2, window_bounds = array<i64: 1, 64>}, {pipeline_mode = #tpu.pipeline_mode<synchronous>, transform_indices = @transform_3, window_bounds = array<i64: 64, 64>}, {pipeline_mode = #tpu.pipeline_mode<synchronous>, transform_indices = @transform_4, window_bounds = array<i64: 1, 64>}, {pipeline_mode = #tpu.pipeline_mode<synchronous>, transform_indices = @transform_5, window_bounds = array<i64: 64, 2>}, {pipeline_mode = #tpu.pipeline_mode<synchronous>, transform_indices = @transform_6, window_bounds = array<i64: 1, 2>}, {transform_indices = @transform_7, window_bounds = array<i64: 2, 2>}]} {
    %c0 = arith.constant 0 : index
    %c0_0 = arith.constant 0 : index
    %0 = vector.load %arg1[%c0, %c0_0] : memref<2x16xf32, #tpu.memory_space<vmem>>, vector<2x16xf32>
    %c0_1 = arith.constant 0 : index
    %c0_2 = arith.constant 0 : index
    %1 = vector.load %arg2[%c0_1, %c0_2] : memref<16x64xf32, #tpu.memory_space<vmem>>, vector<16x64xf32>
    %cst = arith.constant dense<0.000000e+00> : vector<2x64xf32>
    %2 = tpu.matmul %0, %1, %cst {dimension_numbers = #tpu.dot_dimension_numbers<[1], [0], [0], [1], [0, 0, 1, 1], [], []>} : vector<2x16xf32>, vector<16x64xf32>, vector<2x64xf32> -> vector<2x64xf32>
    %c0_3 = arith.constant 0 : index
    %c0_4 = arith.constant 0 : index
    %3 = vector.load %arg3[%c0_3, %c0_4] : memref<1x64xf32, #tpu.memory_space<vmem>>, vector<1x64xf32>
    %4 = vector.broadcast %3 : vector<1x64xf32> to vector<2x64xf32>
    %5 = arith.addf %2, %4 : vector<2x64xf32>
    %cst_5 = arith.constant 0.000000e+00 : f32
    %6 = vector.broadcast %cst_5 : f32 to vector<2x64xf32>
    %7 = arith.maximumf %5, %6 : vector<2x64xf32>
    %c0_6 = arith.constant 0 : index
    %c0_7 = arith.constant 0 : index
    %8 = vector.load %arg4[%c0_6, %c0_7] : memref<64x64xf32, #tpu.memory_space<vmem>>, vector<64x64xf32>
    %cst_8 = arith.constant dense<0.000000e+00> : vector<2x64xf32>
    %9 = tpu.matmul %7, %8, %cst_8 {dimension_numbers = #tpu.dot_dimension_numbers<[1], [0], [0], [1], [0, 0, 1, 1], [], []>} : vector<2x64xf32>, vector<64x64xf32>, vector<2x64xf32> -> vector<2x64xf32>
    %c0_9 = arith.constant 0 : index
    %c0_10 = arith.constant 0 : index
    %10 = vector.load %arg5[%c0_9, %c0_10] : memref<1x64xf32, #tpu.memory_space<vmem>>, vector<1x64xf32>
    %11 = vector.broadcast %10 : vector<1x64xf32> to vector<2x64xf32>
    %12 = arith.addf %9, %11 : vector<2x64xf32>
    %cst_11 = arith.constant 0.000000e+00 : f32
    %13 = vector.broadcast %cst_11 : f32 to vector<2x64xf32>
    %14 = arith.maximumf %12, %13 : vector<2x64xf32>
    %c0_12 = arith.constant 0 : index
    %c0_13 = arith.constant 0 : index
    %15 = vector.load %arg6[%c0_12, %c0_13] : memref<64x2xf32, #tpu.memory_space<vmem>>, vector<64x2xf32>
    %cst_14 = arith.constant dense<0.000000e+00> : vector<2x2xf32>
    %16 = tpu.matmul %14, %15, %cst_14 {dimension_numbers = #tpu.dot_dimension_numbers<[1], [0], [0], [1], [0, 0, 1, 1], [], []>} : vector<2x64xf32>, vector<64x2xf32>, vector<2x2xf32> -> vector<2x2xf32>
    %c0_15 = arith.constant 0 : index
    %c0_16 = arith.constant 0 : index
    %17 = vector.load %arg7[%c0_15, %c0_16] : memref<1x2xf32, #tpu.memory_space<vmem>>, vector<1x2xf32>
    %18 = vector.broadcast %17 : vector<1x2xf32> to vector<2x2xf32>
    %19 = arith.addf %16, %18 : vector<2x2xf32>
    %c0_17 = arith.constant 0 : index
    %c0_18 = arith.constant 0 : index
    %20 = vector.load %arg8[%c0_17, %c0_18] : memref<2x2xf32, #tpu.memory_space<vmem>>, vector<2x2xf32>
    tpu.vector_store %arg8[%c0_17, %c0_18], %19 {strides = array<i32>} : memref<2x2xf32, #tpu.memory_space<vmem>>, vector<2x2xf32>,
    return
  }
  func.func @transform_0(%arg0: i32) -> (i32, i32) {
    %c0_i32 = arith.constant 0 : i32
    %c0_i32_0 = arith.constant 0 : i32
    return %arg0, %c0_i32 : i32, i32
  }
  func.func @transform_1(%arg0: i32) -> (i32, i32) {
    %c0_i32 = arith.constant 0 : i32
    %c0_i32_0 = arith.constant 0 : i32
    %c0_i32_1 = arith.constant 0 : i32
    return %c0_i32, %c0_i32_0 : i32, i32
  }
  func.func @transform_2(%arg0: i32) -> (i32, i32) {
    %c0_i32 = arith.constant 0 : i32
    %c0_i32_0 = arith.constant 0 : i32
    %c0_i32_1 = arith.constant 0 : i32
    return %c0_i32, %c0_i32_0 : i32, i32
  }
  func.func @transform_3(%arg0: i32) -> (i32, i32) {
    %c0_i32 = arith.constant 0 : i32
    %c0_i32_0 = arith.constant 0 : i32
    %c0_i32_1 = arith.constant 0 : i32
    return %c0_i32, %c0_i32_0 : i32, i32
  }
  func.func @transform_4(%arg0: i32) -> (i32, i32) {
    %c0_i32 = arith.constant 0 : i32
    %c0_i32_0 = arith.constant 0 : i32
    %c0_i32_1 = arith.constant 0 : i32
    return %c0_i32, %c0_i32_0 : i32, i32
  }
  func.func @transform_5(%arg0: i32) -> (i32, i32) {
    %c0_i32 = arith.constant 0 : i32
    %c0_i32_0 = arith.constant 0 : i32
    %c0_i32_1 = arith.constant 0 : i32
    return %c0_i32, %c0_i32_0 : i32, i32
  }
  func.func @transform_6(%arg0: i32) -> (i32, i32) {
    %c0_i32 = arith.constant 0 : i32
    %c0_i32_0 = arith.constant 0 : i32
    %c0_i32_1 = arith.constant 0 : i32
    return %c0_i32, %c0_i32_0 : i32, i32
  }
  func.func @transform_7(%arg0: i32) -> (i32, i32) {
    %c0_i32 = arith.constant 0 : i32
    %c0_i32_0 = arith.constant 0 : i32
    return %arg0, %c0_i32 : i32, i32
  }
}

</mosaic_0001>

<llo_original>
// kernel: tpu_custom_call.1
$region0: #{tpu_custom_call.1}
  #allocation0 [shape = 'u32[]', space=smem, size = 0x4, offset = 0x4, fixed_abs, tag = 'smem constant byte address 0x4 - core index']
  #allocation1 [shape = 'u32[144,128]{1,0:T(1,128)}', space=vmem, size = 0x12000, scoped, tag = 'internal scratch']
  %s0 = inlined_call_operand.vmem [shape: f32[2,16], index: 0, kind: input, shape index: {}]
  %s1 = inlined_call_operand.hbm [shape: f32[16,64], index: 1, kind: input, shape index: {}]
  %s2 = inlined_call_operand.vmem [shape: f32[1,64], index: 2, kind: input, shape index: {}]
  %s3 = inlined_call_operand.vmem [shape: f32[64,64], index: 3, kind: input, shape index: {}]
  %s4 = inlined_call_operand.vmem [shape: f32[1,64], index: 4, kind: input, shape index: {}]
  %s5 = inlined_call_operand.vmem [shape: f32[64,2], index: 5, kind: input, shape index: {}]
  %s6 = inlined_call_operand.vmem [shape: f32[1,2], index: 6, kind: input, shape index: {}]
  %s7 = inlined_call_operand.hbm [shape: f32[2,2], index: 7, kind: output, shape index: {}]
  %s8 = sld [smem:[#allocation0]]
  $region42: #{tpu_custom_call.1} parent=0
    _
  %s10 = ssub.s32 1, %s8
  %s11 = scalar_select 0, %s10, %s8
  $region1: #{tpu_custom_call.1} parent=0
    #allocation2 [shape = 'u8[8192]{0}', space=vmem, size = 0x2000, scoped, tag = 'input window, operand 1, single buffered']
    #allocation3 [shape = 's32[1]{0}', space=sflag, size = 0x4, scoped, tag = 'scoped memory for tpu_custom_call.1']
    #allocation4 [shape = 's32[1]{0}', space=sflag, size = 0x4, scoped, tag = 'scoped memory for tpu_custom_call.1']
    #allocation5 [shape = 'u8[1024]{0}', space=vmem, size = 0x400, scoped, tag = 'output window, operand 0, single buffered']
    %12 = vsyncpa [#allocation3], 0
    %13 = vsyncpa [#allocation4], 0
    // Predicated region
    $region2: #{tpu_custom_call.1} parent=1 // pred_check
      _
    $region3: #{tpu_custom_call.1} parent=1 // pred_check_branch
      %15 = sbr.rel (0) target = $region5
    $region4: #{tpu_custom_call.1} parent=1 // pred_region
      _
    $region5: #{tpu_custom_call.1} parent=1 // pred_fallthru
      _
    // Predicated region
    $region6: #{tpu_custom_call.1} parent=1 // pred_check
      _
    $region7: #{tpu_custom_call.1} parent=1 // pred_check_branch
      %17 = sbr.rel (0) target = $region9
    $region8: #{tpu_custom_call.1} parent=1 // pred_region
      %s19 = ssub.s32 256, 256
      %20 = vsyncadd [#allocation3], %s19
      %s21 = sshll.u32 [#allocation2], 4
      %s22 = int_to_ptr.vmem [resolvable:$true] %s21
      %27 = dma.hbm_to_vmem [thread:$0]  %s1, 256, %s22, [#allocation3], 128, 128, 8
    $region9: #{tpu_custom_call.1} parent=1 // pred_fallthru
      _
    // Predicated region
    $region10: #{tpu_custom_call.1} parent=1 // pred_check
      _
    $region11: #{tpu_custom_call.1} parent=1 // pred_check_branch
      %29 = sbr.rel (0) target = $region13
    $region12: #{tpu_custom_call.1} parent=1 // pred_region
      _
    $region13: #{tpu_custom_call.1} parent=1 // pred_fallthru
      _
    // Predicated region
    $region14: #{tpu_custom_call.1} parent=1 // pred_check
      _
    $region15: #{tpu_custom_call.1} parent=1 // pred_check_branch
      %31 = sbr.rel (0) target = $region17
    $region16: #{tpu_custom_call.1} parent=1 // pred_region
      _
    $region17: #{tpu_custom_call.1} parent=1 // pred_fallthru
      _
    // Predicated region
    $region18: #{tpu_custom_call.1} parent=1 // pred_check
      _
    $region19: #{tpu_custom_call.1} parent=1 // pred_check_branch
      %33 = sbr.rel (0) target = $region21
    $region20: #{tpu_custom_call.1} parent=1 // pred_region
      _
    $region21: #{tpu_custom_call.1} parent=1 // pred_fallthru
      _
    // Predicated region
    $region22: #{tpu_custom_call.1} parent=1 // pred_check
      _
    $region23: #{tpu_custom_call.1} parent=1 // pred_check_branch
      %35 = sbr.rel (0) target = $region25
    $region24: #{tpu_custom_call.1} parent=1 // pred_region
      _
    $region25: #{tpu_custom_call.1} parent=1 // pred_fallthru
      _
    // Predicated region
    $region26: #{tpu_custom_call.1} parent=1 // pred_check
      _
    $region27: #{tpu_custom_call.1} parent=1 // pred_check_branch
      %37 = sbr.rel (0) target = $region29
    $region28: #{tpu_custom_call.1} parent=1 // pred_region
      _
    $region29: #{tpu_custom_call.1} parent=1 // pred_fallthru
      _
    // Predicated region
    $region30: #{tpu_custom_call.1} parent=1 // pred_check
      _
    $region31: #{tpu_custom_call.1} parent=1 // pred_check_branch
      %39 = sbr.rel (0) target = $region33
    $region32: #{tpu_custom_call.1} parent=1 // pred_region
      %40 = dma.done [#allocation3], 256
    $region33: #{tpu_custom_call.1} parent=1 // pred_fallthru
      _
    %v41 = vld [vmem:[%s0] sm:$0x3]
    %v42 = vld [vmem:[#allocation2] sm:$0xff]
    %v43 = vld [vmem:[#allocation2 + $0x8] sm:$0xff]
    %v44 = vld [vmem:[%s2] sm:$0x1]
    %v46 = vlaneseq
    %v47 = vshrl.u32 %v46, 7
    %v48 = vsub.s32 0, %v47
    %v49 = vrot.slane %v44, %v48
    %vm51 = vcmask 130048
    %v53 = vsel %vm51, %v41, 0
    %55 = vmatprep.subr.mxu0 0.0
    %56 = vmatpush1.msra.mxu0 0.0
    %57 = vmatprep.subr.mxu0 0.0
    %58 = vmatpush1.msra.mxu0 0.0
    %59 = vmatprep.subr.mxu0 0.0
    %60 = vmatpush1.msra.mxu0 0.0
    %61 = vmatprep.subr.mxu0 0.0
    %62 = vmatpush1.msra.mxu0 0.0
    %63 = vmatprep.subr.mxu0 0.0
    %64 = vmatpush1.msra.mxu0 0.0
    %65 = vmatprep.subr.mxu0 0.0
    %66 = vmatpush1.msra.mxu0 0.0
    %67 = vmatprep.subr.mxu0 0.0
    %68 = vmatpush1.msra.mxu0 0.0
    %69 = vmatprep.subr.mxu0 0.0
    %70 = vmatpush1.msra.mxu0 0.0
    %71 = vmatprep.subr.mxu0 0.0
    %72 = vmatpush1.msra.mxu0 0.0
    %73 = vmatprep.subr.mxu0 0.0
    %74 = vmatpush1.msra.mxu0 0.0
    %75 = vmatprep.subr.mxu0 0.0
    %76 = vmatpush1.msra.mxu0 0.0
    %77 = vmatprep.subr.mxu0 0.0
    %78 = vmatpush1.msra.mxu0 0.0
    %79 = vmatprep.subr.mxu0 0.0
    %80 = vmatpush1.msra.mxu0 0.0
    %81 = vmatprep.subr.mxu0 0.0
    %82 = vmatpush1.msra.mxu0 0.0
    %83 = vmatprep.subr.mxu0 0.0
    %84 = vmatpush1.msra.mxu0 %v43
    %85 = vmatprep.subr.mxu0 0.0
    %86 = vmatpush1.msra.mxu0 %v42
    %87 = vmatprep.subr.mxu0 0.0
    %88 = vmatpush2.msra.mxu0 0.0
    %89 = vmatprep.subr.mxu0 0.0
    %90 = vmatpush2.msra.mxu0 0.0
    %91 = vmatprep.subr.mxu0 0.0
    %92 = vmatpush2.msra.mxu0 0.0
    %93 = vmatprep.subr.mxu0 0.0
    %94 = vmatpush2.msra.mxu0 0.0
    %95 = vmatprep.subr.mxu0 0.0
    %96 = vmatpush2.msra.mxu0 0.0
    %97 = vmatprep.subr.mxu0 0.0
    %98 = vmatpush2.msra.mxu0 0.0
    %99 = vmatprep.subr.mxu0 0.0
    %100 = vmatpush2.msra.mxu0 0.0
    %101 = vmatprep.subr.mxu0 0.0
    %102 = vmatpush2.msra.mxu0 0.0
    %103 = vmatprep.subr.mxu0 0.0
    %104 = vmatpush2.msra.mxu0 0.0
    %105 = vmatprep.subr.mxu0 0.0
    %106 = vmatpush2.msra.mxu0 0.0
    %107 = vmatprep.subr.mxu0 0.0
    %108 = vmatpush2.msra.mxu0 0.0
    %109 = vmatprep.subr.mxu0 0.0
    %110 = vmatpush2.msra.mxu0 0.0
    %111 = vmatprep.subr.mxu0 0.0
    %112 = vmatpush2.msra.mxu0 0.0
    %113 = vmatprep.subr.mxu0 0.0
    %114 = vmatpush2.msra.mxu0 0.0
    %115 = vmatprep.subr.mxu0 0.0
    %116 = vmatpush2.msra.mxu0 0.0
    %117 = vmatprep.subr.mxu0 0.0
    %118 = vmatpush2.msra.mxu0 0.0
    %119 = vmatprep.mubr.f32.mxu0 0.0
    %120 = vmatmul.mubr.f32.gmra.mxu0 %v53
    %v121 = vpop.f32.mrf.mxu0
    %v122 = vadd.f32 %v49, %v121
    %v123 = vpop.f32.mrf.mxu0
    %124 = vdwg.mxu0
    %v125 = vmax.f32 %v122, 0.0
    %v126 = vld [vmem:[%s3] sm:$0xff]
    %v127 = vld [vmem:[%s3 + $0x8] sm:$0xff]
    %v128 = vld [vmem:[%s3 + $0x10] sm:$0xff]
    %v129 = vld [vmem:[%s3 + $0x18] sm:$0xff]
    %v130 = vld [vmem:[%s3 + $0x20] sm:$0xff]
    %v131 = vld [vmem:[%s3 + $0x28] sm:$0xff]
    %v132 = vld [vmem:[%s3 + $0x30] sm:$0xff]
    %v133 = vld [vmem:[%s3 + $0x38] sm:$0xff]
    %v134 = vld [vmem:[%s4] sm:$0x1]
    %v136 = vlaneseq
    %v137 = vshrl.u32 %v136, 7
    %v138 = vsub.s32 0, %v137
    %v139 = vrot.slane %v134, %v138
    %vm141 = vcmask 523264
    %v143 = vsel %vm141, %v125, 0
    %145 = vmatprep.subr.mxu0 0.0
    %146 = vmatpush1.msra.mxu0 0.0
    %147 = vmatprep.subr.mxu0 0.0
    %148 = vmatpush1.msra.mxu0 0.0
    %149 = vmatprep.subr.mxu0 0.0
    %150 = vmatpush1.msra.mxu0 0.0
    %151 = vmatprep.subr.mxu0 0.0
    %152 = vmatpush1.msra.mxu0 0.0
    %153 = vmatprep.subr.mxu0 0.0
    %154 = vmatpush1.msra.mxu0 0.0
    %155 = vmatprep.subr.mxu0 0.0
    %156 = vmatpush1.msra.mxu0 0.0
    %157 = vmatprep.subr.mxu0 0.0
    %158 = vmatpush1.msra.mxu0 0.0
    %159 = vmatprep.subr.mxu0 0.0
    %160 = vmatpush1.msra.mxu0 0.0
    %161 = vmatprep.subr.mxu0 0.0
    %162 = vmatpush1.msra.mxu0 %v133
    %163 = vmatprep.subr.mxu0 0.0
    %164 = vmatpush1.msra.mxu0 %v132
    %165 = vmatprep.subr.mxu0 0.0
    %166 = vmatpush1.msra.mxu0 %v131
    %167 = vmatprep.subr.mxu0 0.0
    %168 = vmatpush1.msra.mxu0 %v130
    %169 = vmatprep.subr.mxu0 0.0
    %170 = vmatpush1.msra.mxu0 %v129
    %171 = vmatprep.subr.mxu0 0.0
    %172 = vmatpush1.msra.mxu0 %v128
    %173 = vmatprep.subr.mxu0 0.0
    %174 = vmatpush1.msra.mxu0 %v127
    %175 = vmatprep.subr.mxu0 0.0
    %176 = vmatpush1.msra.mxu0 %v126
    %177 = vmatprep.subr.mxu0 0.0
    %178 = vmatpush2.msra.mxu0 0.0
    %179 = vmatprep.subr.mxu0 0.0
    %180 = vmatpush2.msra.mxu0 0.0
    %181 = vmatprep.subr.mxu0 0.0
    %182 = vmatpush2.msra.mxu0 0.0
    %183 = vmatprep.subr.mxu0 0.0
    %184 = vmatpush2.msra.mxu0 0.0
    %185 = vmatprep.subr.mxu0 0.0
    %186 = vmatpush2.msra.mxu0 0.0
    %187 = vmatprep.subr.mxu0 0.0
    %188 = vmatpush2.msra.mxu0 0.0
    %189 = vmatprep.subr.mxu0 0.0
    %190 = vmatpush2.msra.mxu0 0.0
    %191 = vmatprep.subr.mxu0 0.0
    %192 = vmatpush2.msra.mxu0 0.0
    %193 = vmatprep.subr.mxu0 0.0
    %194 = vmatpush2.msra.mxu0 0.0
    %195 = vmatprep.subr.mxu0 0.0
    %196 = vmatpush2.msra.mxu0 0.0
    %197 = vmatprep.subr.mxu0 0.0
    %198 = vmatpush2.msra.mxu0 0.0
    %199 = vmatprep.subr.mxu0 0.0
    %200 = vmatpush2.msra.mxu0 0.0
    %201 = vmatprep.subr.mxu0 0.0
    %202 = vmatpush2.msra.mxu0 0.0
    %203 = vmatprep.subr.mxu0 0.0
    %204 = vmatpush2.msra.mxu0 0.0
    %205 = vmatprep.subr.mxu0 0.0
    %206 = vmatpush2.msra.mxu0 0.0
    %207 = vmatprep.subr.mxu0 0.0
    %208 = vmatpush2.msra.mxu0 0.0
    %209 = vmatprep.mubr.f32.mxu0 0.0
    %210 = vmatmul.mubr.f32.gmra.mxu0 %v143
    %v211 = vpop.f32.mrf.mxu0
    %v212 = vadd.f32 %v139, %v211
    %v213 = vpop.f32.mrf.mxu0
    %214 = vdwg.mxu0
    %v215 = vmax.f32 %v212, 0.0
    %v216 = vld [vmem:[%s5] sm:$0xff]
    %v217 = vld [vmem:[%s5 + $0x8] sm:$0xff]
    %v218 = vld [vmem:[%s5 + $0x10] sm:$0xff]
    %v219 = vld [vmem:[%s5 + $0x18] sm:$0xff]
    %v220 = vld [vmem:[%s5 + $0x20] sm:$0xff]
    %v221 = vld [vmem:[%s5 + $0x28] sm:$0xff]
    %v222 = vld [vmem:[%s5 + $0x30] sm:$0xff]
    %v223 = vld [vmem:[%s5 + $0x38] sm:$0xff]
    %v224 = vld [vmem:[%s6] sm:$0x1]
    %v226 = vlaneseq
    %v227 = vshrl.u32 %v226, 7
    %v228 = vsub.s32 0, %v227
    %v229 = vrot.slane %v224, %v228
    %v232 = vsel %vm141, %v215, 0
    %234 = vmatprep.subr.mxu0 0.0
    %235 = vmatpush1.msra.mxu0 0.0
    %236 = vmatprep.subr.mxu0 0.0
    %237 = vmatpush1.msra.mxu0 0.0
    %238 = vmatprep.subr.mxu0 0.0
    %239 = vmatpush1.msra.mxu0 0.0
    %240 = vmatprep.subr.mxu0 0.0
    %241 = vmatpush1.msra.mxu0 0.0
    %242 = vmatprep.subr.mxu0 0.0
    %243 = vmatpush1.msra.mxu0 0.0
    %244 = vmatprep.subr.mxu0 0.0
    %245 = vmatpush1.msra.mxu0 0.0
    %246 = vmatprep.subr.mxu0 0.0
    %247 = vmatpush1.msra.mxu0 0.0
    %248 = vmatprep.subr.mxu0 0.0
    %249 = vmatpush1.msra.mxu0 0.0
    %250 = vmatprep.subr.mxu0 0.0
    %251 = vmatpush1.msra.mxu0 %v223
    %252 = vmatprep.subr.mxu0 0.0
    %253 = vmatpush1.msra.mxu0 %v222
    %254 = vmatprep.subr.mxu0 0.0
    %255 = vmatpush1.msra.mxu0 %v221
    %256 = vmatprep.subr.mxu0 0.0
    %257 = vmatpush1.msra.mxu0 %v220
    %258 = vmatprep.subr.mxu0 0.0
    %259 = vmatpush1.msra.mxu0 %v219
    %260 = vmatprep.subr.mxu0 0.0
    %261 = vmatpush1.msra.mxu0 %v218
    %262 = vmatprep.subr.mxu0 0.0
    %263 = vmatpush1.msra.mxu0 %v217
    %264 = vmatprep.subr.mxu0 0.0
    %265 = vmatpush1.msra.mxu0 %v216
    %266 = vmatprep.subr.mxu0 0.0
    %267 = vmatpush2.msra.mxu0 0.0
    %268 = vmatprep.subr.mxu0 0.0
    %269 = vmatpush2.msra.mxu0 0.0
    %270 = vmatprep.subr.mxu0 0.0
    %271 = vmatpush2.msra.mxu0 0.0
    %272 = vmatprep.subr.mxu0 0.0
    %273 = vmatpush2.msra.mxu0 0.0
    %274 = vmatprep.subr.mxu0 0.0
    %275 = vmatpush2.msra.mxu0 0.0
    %276 = vmatprep.subr.mxu0 0.0
    %277 = vmatpush2.msra.mxu0 0.0
    %278 = vmatprep.subr.mxu0 0.0
    %279 = vmatpush2.msra.mxu0 0.0
    %280 = vmatprep.subr.mxu0 0.0
    %281 = vmatpush2.msra.mxu0 0.0
    %282 = vmatprep.subr.mxu0 0.0
    %283 = vmatpush2.msra.mxu0 0.0
    %284 = vmatprep.subr.mxu0 0.0
    %285 = vmatpush2.msra.mxu0 0.0
    %286 = vmatprep.subr.mxu0 0.0
    %287 = vmatpush2.msra.mxu0 0.0
    %288 = vmatprep.subr.mxu0 0.0
    %289 = vmatpush2.msra.mxu0 0.0
    %290 = vmatprep.subr.mxu0 0.0
    %291 = vmatpush2.msra.mxu0 0.0
    %292 = vmatprep.subr.mxu0 0.0
    %293 = vmatpush2.msra.mxu0 0.0
    %294 = vmatprep.subr.mxu0 0.0
    %295 = vmatpush2.msra.mxu0 0.0
    %296 = vmatprep.subr.mxu0 0.0
    %297 = vmatpush2.msra.mxu0 0.0
    %298 = vmatprep.mubr.f32.mxu0 0.0
    %299 = vmatmul.mubr.f32.gmra.mxu0 %v232
    %v300 = vpop.f32.mrf.mxu0
    %v301 = vadd.f32 %v229, %v300
    %v302 = vpop.f32.mrf.mxu0
    %303 = vdwg.mxu0
    %vm304 = vcmask 9216
    %305 = vst.msk [vmem:[#allocation5] sm:$0x3] %vm304, %v301
    // Predicated region
    $region34: #{tpu_custom_call.1} parent=1 // pred_check
      _
    $region35: #{tpu_custom_call.1} parent=1 // pred_check_branch
      %307 = sbr.rel (0) target = $region37
    $region36: #{tpu_custom_call.1} parent=1 // pred_region
      %s309 = ssub.s32 32, 32
      %310 = vsyncadd [#allocation4], %s309
      %s312 = sshll.u32 [#allocation5], 4
      %s313 = int_to_ptr.vmem [resolvable:$true] %s312
      %315 = dma.vmem_to_hbm [thread:$0]  %s313, 32, %s7, [#allocation4]
    $region37: #{tpu_custom_call.1} parent=1 // pred_fallthru
      _
    // Predicated region
    $region38: #{tpu_custom_call.1} parent=1 // pred_check
      _
    $region39: #{tpu_custom_call.1} parent=1 // pred_check_branch
      %317 = sbr.rel (0) target = $region41
    $region40: #{tpu_custom_call.1} parent=1 // pred_region
      %318 = dma.done [#allocation4], 32
    $region41: #{tpu_custom_call.1} parent=1 // pred_fallthru
      _
    %319 = vsyncpa [#allocation3], 1
    %320 = vsyncpa [#allocation4], 1

</llo_original>
